<compile_context>
chip_gen: v6e
topology: v6e:2x2x1
jax: 0.10.0
libtpu: 0.0.40
codegen_flags: <defaults>
</compile_context>

<pallas_src>
import functools

import jax
import jax.numpy as jnp
from jax.experimental import pallas as pl
from jax.experimental.pallas import tpu as pltpu


def _ls_ce_kernel(y_pred_ref, y_true_ref, out_ref, *,
                  eps: float, mask_last: bool, valid_rows_last: int):
    logits = y_pred_ref[...].astype(jnp.float32)                 # (TN, C)
    tn, c = logits.shape

    # --- fused log-softmax statistics: one exp pass, log on (TN,1) ---
    m = jnp.max(logits, axis=-1, keepdims=True)                  # XLU reduce #1
    shifted = logits - m                                         # raw f32 logits die here
    sum_exp = jnp.sum(jnp.exp(shifted), axis=-1, keepdims=True)  # EUP exp + XLU reduce #2

    # --- single weighted lane reduction for (smoothing + NLL) combined ---
    # w_j = eps/C + (1-eps)*[j == target]; weights sum to 1 so m and lse cancel:
    #   per_row = lse - sum_j w_j*logit_j = log(sum_exp(shifted)) - sum_j w_j*shifted_j
    tgt = y_true_ref[...]                                        # (TN, 1) int32
    col = jax.lax.broadcasted_iota(jnp.int32, (tn, c), 1)        # (TN, C)
    w_other = eps / c
    w = jnp.where(col == tgt, w_other + (1.0 - eps), w_other)    # (TN, C) f32
    weighted = jnp.sum(shifted * w, axis=-1, keepdims=True)      # XLU reduce #3

    per_row = jnp.log(sum_exp) - weighted                        # (TN, 1)

    def _write(rows):
        # One partial sum per block, splatted into this block's (1, 8, 128) out tile.
        out_ref[...] = jnp.broadcast_to(jnp.sum(rows), out_ref.shape)

    if mask_last:
        last = pl.num_programs(0) - 1

        @pl.when(pl.program_id(0) == last)
        def _():
            ridx = jax.lax.broadcasted_iota(jnp.int32, (tn, 1), 0)
            # select (not multiply): padded rows hold uninitialized VMEM; NaN/Inf in the
            # dead branch must not propagate.
            _write(jnp.where(ridx < valid_rows_last, per_row, 0.0))

        @pl.when(pl.program_id(0) != last)
        def _():
            _write(per_row)
    else:
        _write(per_row)


def _choose_block_rows(n: int, c: int, in_itemsize: int) -> int:
    # VMEM budget for the working set of one grid step:
    #   2 double-buffered input tiles (input dtype) + ~4 f32-sized (TN, C) temporaries
    #   (cast/shifted, exp, iota/weights, product).  ~24 MiB keeps us under the 48 MiB
    #   scoped limit on every generation (v7x: 64 MiB physical).
    budget = 24 * 1024 * 1024
    per_row = c * (2 * in_itemsize + 4 * 4)
    tn = (budget // per_row) // 8 * 8
    tn = max(8, tn)
    tn = min(tn, ((n + 7) // 8) * 8)
    return int(tn)


def label_smoothing_cross_entropy(y_pred, y_true, *, eps: float = 0.1,
                                  reduction: str = "mean",
                                  block_rows: int | None = None):
    """y_pred: (N, C) float logits (any float dtype, cast to f32 in-kernel),
    y_true: (N,) integer class indices.  Returns a scalar float32 loss."""
    if reduction is None:
        raise Exception("Reduction cannot be None")
    if reduction not in ("mean", "sum"):
        raise Exception("Unsupported reduction: %r" % (reduction,))

    n, c = y_pred.shape
    y_true_2d = y_true.astype(jnp.int32).reshape(n, 1)

    in_itemsize = jnp.dtype(y_pred.dtype).itemsize
    if block_rows is None:
        tn = _choose_block_rows(n, c, in_itemsize)
    else:
        tn = max(8, (block_rows // 8) * 8)
        tn = min(tn, ((n + 7) // 8) * 8)

    grid_n = pl.cdiv(n, tn)
    mask_last = (n % tn) != 0
    valid_rows_last = n - (grid_n - 1) * tn

    kernel = functools.partial(_ls_ce_kernel, eps=float(eps),
                               mask_last=mask_last,
                               valid_rows_last=int(valid_rows_last))

    # TODO(synk): for vocab-scale C (>~16K) add a second ("arbitrary") grid axis over C
    #             with an online logsumexp carried in (TN,1) scratch.
    partials = pl.pallas_call(
        kernel,
        out_shape=jax.ShapeDtypeStruct((grid_n, 8, 128), jnp.float32),
        grid_spec=pltpu.PrefetchScalarGridSpec(
            num_scalar_prefetch=0,
            grid=(grid_n,),
            in_specs=[
                pl.BlockSpec((tn, c), lambda i: (i, 0)),   # logits tile
                pl.BlockSpec((tn, 1), lambda i: (i, 0)),   # target indices tile
            ],
            out_specs=pl.BlockSpec((1, 8, 128), lambda i: (i, 0, 0)),
        ),
        compiler_params=pltpu.CompilerParams(
            # Per-block independent partial sums -> safe to shard the N axis across
            # TensorCores (v7x megacore); no-op on single-core v5e/v6e.
            dimension_semantics=("parallel",),
            vmem_limit_bytes=48 * 1024 * 1024,
        ),
    )(y_pred, y_true_2d)

    total = jnp.sum(partials[:, 0, 0])
    if reduction == "mean":
        total = total / n
    return total


def _reference(y_pred, y_true, eps=0.1, reduction="mean"):
    logp = jax.nn.log_softmax(y_pred.astype(jnp.float32), axis=-1)
    c = y_pred.shape[-1]
    neg_logp = -logp
    nll_per_row = -jnp.take_along_axis(
        logp, y_true.astype(jnp.int32)[:, None], axis=-1)[:, 0]
    if reduction == "mean":
        smooth = jnp.mean(jnp.sum(neg_logp, axis=-1))
        nll = jnp.mean(nll_per_row)
    else:
        smooth = jnp.sum(neg_logp)
        nll = jnp.sum(nll_per_row)
    return eps / c * smooth + (1.0 - eps) * nll


if __name__ == "__main__":
    key = jax.random.PRNGKey(0)
    k1, k2, k3, k4, k5, k6 = jax.random.split(key, 6)

    # Small aligned case (single block, no masking).
    N, C = 8, 32
    y_pred = jax.random.normal(k1, (N, C), dtype=jnp.float32)
    y_true = jax.random.randint(k2, (N,), 0, C, dtype=jnp.int32)

    loss = label_smoothing_cross_entropy(y_pred, y_true, eps=0.1, reduction="mean")
    jax.block_until_ready(loss)
    ref = _reference(y_pred, y_true, eps=0.1, reduction="mean")
    assert jnp.allclose(loss, ref, rtol=1e-5, atol=1e-5), (loss, ref)

    loss_sum = label_smoothing_cross_entropy(y_pred, y_true, eps=0.1, reduction="sum")
    jax.block_until_ready(loss_sum)
    ref_sum = _reference(y_pred, y_true, eps=0.1, reduction="sum")
    assert jnp.allclose(loss_sum, ref_sum, rtol=1e-5, atol=1e-5), (loss_sum, ref_sum)

    # Unaligned batch -> exercises the pl.when-gated last-block masking path.
    N2, C2 = 13, 32
    y_pred2 = jax.random.normal(k3, (N2, C2), dtype=jnp.float32)
    y_true2 = jax.random.randint(k4, (N2,), 0, C2, dtype=jnp.int32)
    loss2 = label_smoothing_cross_entropy(y_pred2, y_true2, eps=0.1, reduction="mean")
    jax.block_until_ready(loss2)
    ref2 = _reference(y_pred2, y_true2, eps=0.1, reduction="mean")
    assert jnp.allclose(loss2, ref2, rtol=1e-5, atol=1e-5), (loss2, ref2)

    # Multi-block case (forced small block_rows) -> exercises per-block partial sums
    # under the "parallel" grid and the wrapper-side reduction.
    N3, C3 = 32, 32
    y_pred3 = jax.random.normal(k5, (N3, C3), dtype=jnp.float32)
    y_true3 = jax.random.randint(k6, (N3,), 0, C3, dtype=jnp.int32)
    loss3 = label_smoothing_cross_entropy(y_pred3, y_true3, eps=0.1,
                                          reduction="sum", block_rows=8)
    jax.block_until_ready(loss3)
    ref3 = _reference(y_pred3, y_true3, eps=0.1, reduction="sum")
    assert jnp.allclose(loss3, ref3, rtol=1e-5, atol=1e-5), (loss3, ref3)

    print("KERNEL_OK")
</pallas_src>

<mosaic_0001>
module attributes {stable_mosaic.version = 11 : i64} {
  func.func @_ls_ce_kernel(%arg0: i32, %arg1: memref<8x32xf32, #tpu.memory_space<vmem>>, %arg2: memref<8x1xi32, #tpu.memory_space<vmem>>, %arg3: memref<1x8x128xf32, #tpu.memory_space<vmem>>) attributes {dimension_semantics = [#tpu.dimension_semantics<parallel>], iteration_bounds = array<i64: 1>, scalar_prefetch = 0 : i64, scratch_operands = 0 : i64, tpu.core_type = #tpu.core_type<tc>, window_params = [{transform_indices = @transform_0, window_bounds = array<i64: 8, 32>}, {transform_indices = @transform_1, window_bounds = array<i64: 8, 1>}, {transform_indices = @transform_2, window_bounds = array<i64: 1, 8, 128>}]} {
    %c0 = arith.constant 0 : index
    %c0_0 = arith.constant 0 : index
    %0 = vector.load %arg1[%c0, %c0_0] : memref<8x32xf32, #tpu.memory_space<vmem>>, vector<8x32xf32>
    %cst = arith.constant dense<0xFF800000> : vector<8xf32>
    %1 = vector.multi_reduction <maximumf>, %0, %cst [1] : vector<8x32xf32> to vector<8xf32>
    %2 = vector.shape_cast %1 : vector<8xf32> to vector<8x1xf32>
    %3 = vector.broadcast %2 : vector<8x1xf32> to vector<8x32xf32>
    %4 = arith.subf %0, %3 : vector<8x32xf32>
    %5 = math.exp %4 : vector<8x32xf32>
    %cst_1 = arith.constant dense<0.000000e+00> : vector<8xf32>
    %6 = vector.multi_reduction <add>, %5, %cst_1 [1] : vector<8x32xf32> to vector<8xf32>
    %7 = vector.shape_cast %6 : vector<8xf32> to vector<8x1xf32>
    %c0_2 = arith.constant 0 : index
    %c0_3 = arith.constant 0 : index
    %8 = vector.load %arg2[%c0_2, %c0_3] : memref<8x1xi32, #tpu.memory_space<vmem>>, vector<8x1xi32>
    %9 = tpu.iota {dimensions = array<i32: 1>} : vector<8x32xi32>
    %10 = vector.broadcast %8 : vector<8x1xi32> to vector<8x32xi32>
    %11 = arith.cmpi eq, %9, %10 : vector<8x32xi32>
    %cst_4 = arith.constant 0.903124988 : f32
    %cst_5 = arith.constant 3.125000e-03 : f32
    %12 = vector.broadcast %cst_4 : f32 to vector<8x32xf32>
    %13 = vector.broadcast %cst_5 : f32 to vector<8x32xf32>
    %14 = arith.select %11, %12, %13 : vector<8x32xi1>, vector<8x32xf32>
    %15 = arith.mulf %4, %14 : vector<8x32xf32>
    %cst_6 = arith.constant dense<0.000000e+00> : vector<8xf32>
    %16 = vector.multi_reduction <add>, %15, %cst_6 [1] : vector<8x32xf32> to vector<8xf32>
    %17 = vector.shape_cast %16 : vector<8xf32> to vector<8x1xf32>
    %18 = math.log %7 : vector<8x1xf32>
    %19 = arith.subf %18, %17 : vector<8x1xf32>
    %20 = vector.shape_cast %19 : vector<8x1xf32> to vector<1x8x1xf32>
    %cst_7 = arith.constant dense<0.000000e+00> : vector<1xf32>
    %21 = vector.multi_reduction <add>, %20, %cst_7 [1, 2] : vector<1x8x1xf32> to vector<1xf32>
    %22 = vector.shape_cast %21 : vector<1xf32> to vector<1x1x1xf32>
    %23 = vector.extract %22[0, 0, 0] : f32 from vector<1x1x1xf32>
    %24 = vector.broadcast %23 : f32 to vector<1x8x128xf32>
    %c0_8 = arith.constant 0 : index
    %c0_9 = arith.constant 0 : index
    %c0_10 = arith.constant 0 : index
    %25 = vector.load %arg3[%c0_8, %c0_9, %c0_10] : memref<1x8x128xf32, #tpu.memory_space<vmem>>, vector<1x8x128xf32>
    tpu.vector_store %arg3[%c0_8, %c0_9, %c0_10], %24 {strides = array<i32>} : memref<1x8x128xf32, #tpu.memory_space<vmem>>, vector<1x8x128xf32>,
    return
  }
  func.func @transform_0(%arg0: i32) -> (i32, i32) {
    %c0_i32 = arith.constant 0 : i32
    %c0_i32_0 = arith.constant 0 : i32
    return %arg0, %c0_i32 : i32, i32
  }
  func.func @transform_1(%arg0: i32) -> (i32, i32) {
    %c0_i32 = arith.constant 0 : i32
    %c0_i32_0 = arith.constant 0 : i32
    return %arg0, %c0_i32 : i32, i32
  }
  func.func @transform_2(%arg0: i32) -> (i32, i32, i32) {
    %c0_i32 = arith.constant 0 : i32
    %c0_i32_0 = arith.constant 0 : i32
    %c0_i32_1 = arith.constant 0 : i32
    return %arg0, %c0_i32, %c0_i32_0 : i32, i32, i32
  }
}

</mosaic_0001>

<llo_original>
// kernel: tpu_custom_call.1
$region0: #{tpu_custom_call.1}
  #allocation0 [shape = 'u32[]', space=smem, size = 0x4, offset = 0x4, fixed_abs, tag = 'smem constant byte address 0x4 - core index']
  #allocation1 [shape = 'u32[144,128]{1,0:T(1,128)}', space=vmem, size = 0x12000, scoped, tag = 'internal scratch']
  %s0 = inlined_call_operand.vmem [shape: f32[8,32], index: 0, kind: input, shape index: {}]
  %s1 = inlined_call_operand.vmem [shape: s32[8,1], index: 1, kind: input, shape index: {}]
  %s2 = inlined_call_operand.hbm [shape: f32[1,8,128], index: 2, kind: output, shape index: {}]
  %s3 = sld [smem:[#allocation0]]
  $region18: #{tpu_custom_call.1} parent=0
    _
  %s5 = ssub.s32 1, %s3
  %s6 = scalar_select 0, %s5, %s3
  $region1: #{tpu_custom_call.1} parent=0
    #allocation2 [shape = 'u8[4096]{0}', space=vmem, size = 0x1000, scoped, tag = 'output window, operand 0, single buffered']
    #allocation3 [shape = 's32[1]{0}', space=sflag, size = 0x4, scoped, tag = 'scoped memory for tpu_custom_call.1']
    %7 = vsyncpa [#allocation3], 0
    // Predicated region
    $region2: #{tpu_custom_call.1} parent=1 // pred_check
      _
    $region3: #{tpu_custom_call.1} parent=1 // pred_check_branch
      %9 = sbr.rel (0) target = $region5
    $region4: #{tpu_custom_call.1} parent=1 // pred_region
      _
    $region5: #{tpu_custom_call.1} parent=1 // pred_fallthru
      _
    // Predicated region
    $region6: #{tpu_custom_call.1} parent=1 // pred_check
      _
    $region7: #{tpu_custom_call.1} parent=1 // pred_check_branch
      %11 = sbr.rel (0) target = $region9
    $region8: #{tpu_custom_call.1} parent=1 // pred_region
      _
    $region9: #{tpu_custom_call.1} parent=1 // pred_fallthru
      _
    %v12 = vld [vmem:[%s0] sm:$0xff]
    %vm13 = vcmask 261120
    %v14 = vsel %vm13, %v12, -inf
    %15 = vmax.xlane.f32.xlu0 %v14
    %v16 = vpop.xlane.xlu0 %15
    %v17 = vsub.f32 %v12, %v16
    %v18 = vmul.f32 %v17, 1.442695
    %v19 = vpow.pop %v18
    %v20 = vsel %vm13, %v19, 0.0
    %21 = vadd.xlane.f32.xlu0 %v20
    %v22 = vpop.xlane.xlu0 %21
    %v23 = vld [vmem:[%s1] sm:$0xff]
    %v24 = vlaneseq
    %v25 = vand.u32 %v24, 127
    %26 = vset.pattern.permute.xlu0 0
    %27 = vperm.xlu0 %26, %v23
    %v28 = vpop.permute.xlu0 %27
    %vm29 = vcmp.eq.s32.totalorder %v25, %v28
    %v30 = vsel %vm29, 0.903125, 0.003125
    %v31 = vmul.f32 %v17, %v30
    %v32 = vsel %vm13, %v31, 0.0
    %33 = vadd.xlane.f32.xlu0 %v32
    %v34 = vpop.xlane.xlu0 %33
    %v35 = vlog2.pop %v22
    %v36 = vmul.f32 %v35, 0.6931472
    %v37 = vsub.f32 %v36, %v34
    %vm38 = vcmask 7168
    %v39 = vsel %vm38, %v37, 0.0
    %40 = vadd.xlane.f32.xlu0 %v39
    %v41 = vpop.xlane.xlu0 %40
    %v42 = vrot.slane %v41, 4
    %v43 = vadd.f32 %v41, %v42
    %v44 = vrot.slane %v43, 2
    %v45 = vadd.f32 %v43, %v44
    %v46 = vrot.slane %v45, 1
    %v47 = vadd.f32 %v45, %v46
    %s48 = vtos %v47
    %v49 = vstv %s48
    %50 = vst [vmem:[#allocation2] sm:$0xff] %v49
    // Predicated region
    $region10: #{tpu_custom_call.1} parent=1 // pred_check
      _
    $region11: #{tpu_custom_call.1} parent=1 // pred_check_branch
      %52 = sbr.rel (0) target = $region13
    $region12: #{tpu_custom_call.1} parent=1 // pred_region
      %s54 = ssub.s32 128, 128
      %55 = vsyncadd [#allocation3], %s54
      %s57 = sshll.u32 [#allocation2], 4
      %s58 = int_to_ptr.vmem [resolvable:$true] %s57
      %60 = dma.vmem_to_hbm [thread:$0]  %s58, 128, %s2, [#allocation3]
    $region13: #{tpu_custom_call.1} parent=1 // pred_fallthru
      _
    // Predicated region
    $region14: #{tpu_custom_call.1} parent=1 // pred_check
      _
    $region15: #{tpu_custom_call.1} parent=1 // pred_check_branch
      %62 = sbr.rel (0) target = $region17
    $region16: #{tpu_custom_call.1} parent=1 // pred_region
      %63 = dma.done [#allocation3], 128
    $region17: #{tpu_custom_call.1} parent=1 // pred_fallthru
      _
    %64 = vsyncpa [#allocation3], 1

</llo_original>
